<compile_context>
chip_gen: v6e
topology: v6e:2x2x1
jax: 0.10.0
libtpu: 0.0.40
codegen_flags: <defaults>
</compile_context>

<pallas_src>
import math
import functools

import jax
import jax.numpy as jnp
from jax.experimental import pallas as pl
from jax.experimental.pallas import tpu as pltpu


def _round_up(x, m):
    return (x + m - 1) // m * m


def _cdiv(a, b):
    return (a + b - 1) // b


def mlp_kernel(x_ref, w1_ref, b1_ref, w2_ref, b2_ref, w3_ref, b3_ref, o_ref):
    # Layer 1: Linear + ReLU. Matmul operands in the weights' dtype (bf16 on
    # the fast path), f32 accumulation; bias-add / ReLU stay f32.
    x = x_ref[...].astype(w1_ref.dtype)
    h1 = jnp.dot(x, w1_ref[...], preferred_element_type=jnp.float32)
    h1 = jnp.maximum(h1 + b1_ref[...], 0.0)
    # Layer 2: Linear + ReLU.
    h2 = jnp.dot(h1.astype(w2_ref.dtype), w2_ref[...],
                 preferred_element_type=jnp.float32)
    h2 = jnp.maximum(h2 + b2_ref[...], 0.0)
    # Layer 3: Linear (output dim padded to 128 lanes; padded bias ~ -1e30).
    logits = jnp.dot(h2.astype(w3_ref.dtype), w3_ref[...],
                     preferred_element_type=jnp.float32)
    logits = logits + b3_ref[...]
    # Numerically stable LogSoftmax over the last dim. Padded columns carry a
    # huge negative bias, so exp(shifted) == 0 there and the real classes'
    # log-probabilities are unchanged.
    m = jnp.max(logits, axis=-1, keepdims=True)
    shifted = logits - m
    lse = jnp.log(jnp.sum(jnp.exp(shifted), axis=-1, keepdims=True))
    o_ref[...] = (shifted - lse).astype(o_ref.dtype)


@functools.partial(jax.jit,
                   static_argnames=("block_batch", "use_bf16", "out_dtype"))
def neuralnet_forward(x, w1, b1, w2, b2, w3, b3, *, block_batch=2048,
                      use_bf16=True, out_dtype=None):
    """x: [B, inodes] f32. Weights pre-transposed to [in, out]. Biases [1, out].
    Returns log-probabilities [B, onodes] (bf16 on the default fast path)."""
    B, inodes = x.shape
    hnodes1 = w1.shape[1]
    hnodes2 = w2.shape[1]
    onodes = w3.shape[1]
    odtype = out_dtype if out_dtype is not None else (
        jnp.bfloat16 if use_bf16 else jnp.float32)

    # --- zero-pad hidden dims to 128-lane multiples (numerically exact) and
    #     the output dim to 128 lanes (lane-dense, unmasked stores) ---
    h1p = _round_up(hnodes1, 128)
    h2p = _round_up(hnodes2, 128)
    n_pad = _round_up(onodes, 128)
    w1p = jnp.pad(w1, ((0, 0), (0, h1p - hnodes1)))
    b1p = jnp.pad(b1, ((0, 0), (0, h1p - hnodes1)))
    w2p = jnp.pad(w2, ((0, h1p - hnodes1), (0, h2p - hnodes2)))
    b2p = jnp.pad(b2, ((0, 0), (0, h2p - hnodes2)))
    w3p = jnp.pad(w3, ((0, h2p - hnodes2), (0, n_pad - onodes)))
    # padded logits must be ~ -inf so they don't perturb the log-sum-exp
    b3p = jnp.pad(b3, ((0, 0), (0, n_pad - onodes)), constant_values=-1e30)

    # bf16 matmul operands -> native MXU rate; biases / accumulation stay f32.
    if use_bf16:
        w1p, w2p, w3p = (w.astype(jnp.bfloat16) for w in (w1p, w2p, w3p))
    # TODO(synk): if the real model uses inodes=784, pad the input-feature dim
    # to 896 at data-prep time for aligned lane-dense x DMA (not done here).

    # --- batch tile: multiple of 8 sublanes, splits the batch evenly so that
    #     padding waste stays < 8 rows per grid step (B=300 -> 304, not 512) ---
    n_tiles = max(1, _cdiv(B, block_batch))
    tb = _round_up(_cdiv(B, n_tiles), 8)
    b_pad = _round_up(B, tb)
    x_p = jnp.pad(x, ((0, b_pad - B), (0, 0))) if b_pad != B else x
    grid = (b_pad // tb,)

    def resident(arr):
        # Full-array block with a constant index_map: weights/biases are DMA'd
        # once and stay VMEM-resident across the whole batch grid.
        # (pipeline_mode=pl.Buffered(1) would halve their VMEM footprint for
        #  very large v7x batch tiles; negligible at these sizes.)
        return pl.BlockSpec(arr.shape, lambda i: (0, 0))

    resident_args = (w1p, b1p, w2p, b2p, w3p, b3p)
    cost = pl.CostEstimate(
        flops=2 * b_pad * (inodes * h1p + h1p * h2p + h2p * n_pad),
        transcendentals=b_pad * (n_pad + 1),   # exp per padded logit + log per row
        bytes_accessed=(x_p.size * x_p.dtype.itemsize
                        + b_pad * n_pad * jnp.dtype(odtype).itemsize
                        + sum(int(a.size) * a.dtype.itemsize
                              for a in resident_args)),
    )

    out = pl.pallas_call(
        mlp_kernel,
        out_shape=jax.ShapeDtypeStruct((b_pad, n_pad), odtype),
        grid=grid,
        in_specs=[pl.BlockSpec((tb, inodes), lambda i: (i, 0))]   # activation tile
                 + [resident(a) for a in resident_args],
        out_specs=pl.BlockSpec((tb, n_pad), lambda i: (i, 0)),
        compiler_params=pltpu.CompilerParams(
            dimension_semantics=("parallel",),
        ),
        cost_estimate=cost,
    )(x_p, *resident_args)

    # TODO(synk): for the NLLLoss consumer, fuse the label gather into the
    # kernel (write 1 value/row) instead of slicing the padded block here.
    return out[:B, :onodes]


def init_linear_params(key, in_features, out_features):
    """Deterministic init mimicking torch.nn.Linear (uniform +/- 1/sqrt(fan_in)).
    Weight returned already transposed to [in_features, out_features]."""
    kw, kb = jax.random.split(key)
    bound = 1.0 / math.sqrt(in_features)
    w = jax.random.uniform(kw, (in_features, out_features), jnp.float32,
                           -bound, bound)
    b = jax.random.uniform(kb, (1, out_features), jnp.float32, -bound, bound)
    return w, b


def _reference(x, w1, b1, w2, b2, w3, b3):
    h1 = jnp.maximum(x @ w1 + b1, 0.0)
    h2 = jnp.maximum(h1 @ w2 + b2, 0.0)
    return jax.nn.log_softmax(h2 @ w3 + b3, axis=1)


if __name__ == "__main__":
    # Small shapes consistent with the module's forward: flattened-image MLP.
    # TODO(synk): training path (NLLLoss / SGD / DataLoader over MNIST) is out
    # of scope; only the forward pass is implemented as a kernel.
    inodes, hnodes1, hnodes2, onodes = 64, 128, 64, 10

    key = jax.random.PRNGKey(0)
    kx, kx2, k1, k2, k3 = jax.random.split(key, 5)

    w1, b1 = init_linear_params(k1, inodes, hnodes1)
    w2, b2 = init_linear_params(k2, hnodes1, hnodes2)
    w3, b3 = init_linear_params(k3, hnodes2, onodes)

    x_small = jax.random.normal(kx, (8, inodes), jnp.float32)
    ref_small = _reference(x_small, w1, b1, w2, b2, w3, b3)
    x_big = jax.random.normal(kx2, (300, inodes), jnp.float32)
    ref_big = _reference(x_big, w1, b1, w2, b2, w3, b3)

    def check(out, ref, shape, tol):
        return (out.shape == shape) and bool(
            jnp.allclose(out.astype(jnp.float32), ref, atol=tol, rtol=tol))

    ok = True

    # Case 1: exact f32 path (single grid step) -- tight tolerance.
    out1 = jax.block_until_ready(
        neuralnet_forward(x_small, w1, b1, w2, b2, w3, b3,
                          use_bf16=False, out_dtype=jnp.float32))
    ok &= check(out1, ref_small, (8, onodes), 1e-5)

    # Case 2: default fast path (bf16 matmul operands + bf16 output), tiny batch.
    out2 = jax.block_until_ready(
        neuralnet_forward(x_small, w1, b1, w2, b2, w3, b3))
    ok &= check(out2, ref_small, (8, onodes), 5e-2)

    # Case 3: 300-row batch, single even tile (pads to 304 rows, not 512).
    out3 = jax.block_until_ready(
        neuralnet_forward(x_big, w1, b1, w2, b2, w3, b3))
    ok &= check(out3, ref_big, (300, onodes), 5e-2)

    # Case 4: force multiple grid steps (3 tiles of 104 rows) to exercise the
    # batch pipeline and the megacore-parallel grid axis.
    out4 = jax.block_until_ready(
        neuralnet_forward(x_big, w1, b1, w2, b2, w3, b3, block_batch=128))
    ok &= check(out4, ref_big, (300, onodes), 5e-2)

    assert ok, "Pallas MLP kernel mismatch vs. reference"
    print("KERNEL_OK")
</pallas_src>

<mosaic_0001>
module attributes {stable_mosaic.version = 11 : i64} {
  func.func @mlp_kernel(%arg0: i32, %arg1: memref<8x64xf32, #tpu.memory_space<vmem>>, %arg2: memref<64x128xf32, #tpu.memory_space<vmem>>, %arg3: memref<1x128xf32, #tpu.memory_space<vmem>>, %arg4: memref<128x128xf32, #tpu.memory_space<vmem>>, %arg5: memref<1x128xf32, #tpu.memory_space<vmem>>, %arg6: memref<128x128xf32, #tpu.memory_space<vmem>>, %arg7: memref<1x128xf32, #tpu.memory_space<vmem>>, %arg8: memref<8x128xf32, #tpu.memory_space<vmem>>) attributes {dimension_semantics = [#tpu.dimension_semantics<parallel>], iteration_bounds = array<i64: 1>, scalar_prefetch = 0 : i64, scratch_operands = 0 : i64, tpu.core_type = #tpu.core_type<tc>, window_params = [{transform_indices = @transform_0, window_bounds = array<i64: 8, 64>}, {pipeline_mode = #tpu.pipeline_mode<synchronous>, transform_indices = @transform_1, window_bounds = array<i64: 64, 128>}, {pipeline_mode = #tpu.pipeline_mode<synchronous>, transform_indices = @transform_2, window_bounds = array<i64: 1, 128>}, {pipeline_mode = #tpu.pipeline_mode<synchronous>, transform_indices = @transform_3, window_bounds = array<i64: 128, 128>}, {pipeline_mode = #tpu.pipeline_mode<synchronous>, transform_indices = @transform_4, window_bounds = array<i64: 1, 128>}, {pipeline_mode = #tpu.pipeline_mode<synchronous>, transform_indices = @transform_5, window_bounds = array<i64: 128, 128>}, {pipeline_mode = #tpu.pipeline_mode<synchronous>, transform_indices = @transform_6, window_bounds = array<i64: 1, 128>}, {transform_indices = @transform_7, window_bounds = array<i64: 8, 128>}]} {
    %c0 = arith.constant 0 : index
    %c0_0 = arith.constant 0 : index
    %0 = vector.load %arg1[%c0, %c0_0] : memref<8x64xf32, #tpu.memory_space<vmem>>, vector<8x64xf32>
    %c0_1 = arith.constant 0 : index
    %c0_2 = arith.constant 0 : index
    %1 = vector.load %arg2[%c0_1, %c0_2] : memref<64x128xf32, #tpu.memory_space<vmem>>, vector<64x128xf32>
    %cst = arith.constant dense<0.000000e+00> : vector<8x128xf32>
    %2 = tpu.matmul %0, %1, %cst {dimension_numbers = #tpu.dot_dimension_numbers<[1], [0], [0], [1], [0, 0, 1, 1], [], []>} : vector<8x64xf32>, vector<64x128xf32>, vector<8x128xf32> -> vector<8x128xf32>
    %c0_3 = arith.constant 0 : index
    %c0_4 = arith.constant 0 : index
    %3 = vector.load %arg3[%c0_3, %c0_4] : memref<1x128xf32, #tpu.memory_space<vmem>>, vector<1x128xf32>
    %4 = vector.broadcast %3 : vector<1x128xf32> to vector<8x128xf32>
    %5 = arith.addf %2, %4 : vector<8x128xf32>
    %cst_5 = arith.constant 0.000000e+00 : f32
    %6 = vector.broadcast %cst_5 : f32 to vector<8x128xf32>
    %7 = arith.maximumf %5, %6 : vector<8x128xf32>
    %c0_6 = arith.constant 0 : index
    %c0_7 = arith.constant 0 : index
    %8 = vector.load %arg4[%c0_6, %c0_7] : memref<128x128xf32, #tpu.memory_space<vmem>>, vector<128x128xf32>
    %cst_8 = arith.constant dense<0.000000e+00> : vector<8x128xf32>
    %9 = tpu.matmul %7, %8, %cst_8 {dimension_numbers = #tpu.dot_dimension_numbers<[1], [0], [0], [1], [0, 0, 1, 1], [], []>} : vector<8x128xf32>, vector<128x128xf32>, vector<8x128xf32> -> vector<8x128xf32>
    %c0_9 = arith.constant 0 : index
    %c0_10 = arith.constant 0 : index
    %10 = vector.load %arg5[%c0_9, %c0_10] : memref<1x128xf32, #tpu.memory_space<vmem>>, vector<1x128xf32>
    %11 = vector.broadcast %10 : vector<1x128xf32> to vector<8x128xf32>
    %12 = arith.addf %9, %11 : vector<8x128xf32>
    %cst_11 = arith.constant 0.000000e+00 : f32
    %13 = vector.broadcast %cst_11 : f32 to vector<8x128xf32>
    %14 = arith.maximumf %12, %13 : vector<8x128xf32>
    %c0_12 = arith.constant 0 : index
    %c0_13 = arith.constant 0 : index
    %15 = vector.load %arg6[%c0_12, %c0_13] : memref<128x128xf32, #tpu.memory_space<vmem>>, vector<128x128xf32>
    %cst_14 = arith.constant dense<0.000000e+00> : vector<8x128xf32>
    %16 = tpu.matmul %14, %15, %cst_14 {dimension_numbers = #tpu.dot_dimension_numbers<[1], [0], [0], [1], [0, 0, 1, 1], [], []>} : vector<8x128xf32>, vector<128x128xf32>, vector<8x128xf32> -> vector<8x128xf32>
    %c0_15 = arith.constant 0 : index
    %c0_16 = arith.constant 0 : index
    %17 = vector.load %arg7[%c0_15, %c0_16] : memref<1x128xf32, #tpu.memory_space<vmem>>, vector<1x128xf32>
    %18 = vector.broadcast %17 : vector<1x128xf32> to vector<8x128xf32>
    %19 = arith.addf %16, %18 : vector<8x128xf32>
    %cst_17 = arith.constant dense<0xFF800000> : vector<8xf32>
    %20 = vector.multi_reduction <maximumf>, %19, %cst_17 [1] : vector<8x128xf32> to vector<8xf32>
    %21 = vector.shape_cast %20 : vector<8xf32> to vector<8x1xf32>
    %22 = vector.broadcast %21 : vector<8x1xf32> to vector<8x128xf32>
    %23 = arith.subf %19, %22 : vector<8x128xf32>
    %24 = math.exp %23 : vector<8x128xf32>
    %cst_18 = arith.constant dense<0.000000e+00> : vector<8xf32>
    %25 = vector.multi_reduction <add>, %24, %cst_18 [1] : vector<8x128xf32> to vector<8xf32>
    %26 = vector.shape_cast %25 : vector<8xf32> to vector<8x1xf32>
    %27 = math.log %26 : vector<8x1xf32>
    %28 = vector.broadcast %27 : vector<8x1xf32> to vector<8x128xf32>
    %29 = arith.subf %23, %28 : vector<8x128xf32>
    %c0_19 = arith.constant 0 : index
    %c0_20 = arith.constant 0 : index
    %30 = vector.load %arg8[%c0_19, %c0_20] : memref<8x128xf32, #tpu.memory_space<vmem>>, vector<8x128xf32>
    tpu.vector_store %arg8[%c0_19, %c0_20], %29 {strides = array<i32>} : memref<8x128xf32, #tpu.memory_space<vmem>>, vector<8x128xf32>,
    return
  }
  func.func @transform_0(%arg0: i32) -> (i32, i32) {
    %c0_i32 = arith.constant 0 : i32
    %c0_i32_0 = arith.constant 0 : i32
    return %arg0, %c0_i32 : i32, i32
  }
  func.func @transform_1(%arg0: i32) -> (i32, i32) {
    %c0_i32 = arith.constant 0 : i32
    %c0_i32_0 = arith.constant 0 : i32
    %c0_i32_1 = arith.constant 0 : i32
    return %c0_i32, %c0_i32_0 : i32, i32
  }
  func.func @transform_2(%arg0: i32) -> (i32, i32) {
    %c0_i32 = arith.constant 0 : i32
    %c0_i32_0 = arith.constant 0 : i32
    %c0_i32_1 = arith.constant 0 : i32
    return %c0_i32, %c0_i32_0 : i32, i32
  }
  func.func @transform_3(%arg0: i32) -> (i32, i32) {
    %c0_i32 = arith.constant 0 : i32
    %c0_i32_0 = arith.constant 0 : i32
    %c0_i32_1 = arith.constant 0 : i32
    return %c0_i32, %c0_i32_0 : i32, i32
  }
  func.func @transform_4(%arg0: i32) -> (i32, i32) {
    %c0_i32 = arith.constant 0 : i32
    %c0_i32_0 = arith.constant 0 : i32
    %c0_i32_1 = arith.constant 0 : i32
    return %c0_i32, %c0_i32_0 : i32, i32
  }
  func.func @transform_5(%arg0: i32) -> (i32, i32) {
    %c0_i32 = arith.constant 0 : i32
    %c0_i32_0 = arith.constant 0 : i32
    %c0_i32_1 = arith.constant 0 : i32
    return %c0_i32, %c0_i32_0 : i32, i32
  }
  func.func @transform_6(%arg0: i32) -> (i32, i32) {
    %c0_i32 = arith.constant 0 : i32
    %c0_i32_0 = arith.constant 0 : i32
    %c0_i32_1 = arith.constant 0 : i32
    return %c0_i32, %c0_i32_0 : i32, i32
  }
  func.func @transform_7(%arg0: i32) -> (i32, i32) {
    %c0_i32 = arith.constant 0 : i32
    %c0_i32_0 = arith.constant 0 : i32
    return %arg0, %c0_i32 : i32, i32
  }
}

</mosaic_0001>

<llo_original>
// kernel: neuralnet_forward.1
$region0: #{neuralnet_forward.1}
  #allocation0 [shape = 'u32[]', space=smem, size = 0x4, offset = 0x4, fixed_abs, tag = 'smem constant byte address 0x4 - core index']
  #allocation1 [shape = 'u32[144,128]{1,0:T(1,128)}', space=vmem, size = 0x12000, scoped, tag = 'internal scratch']
  %s0 = inlined_call_operand.vmem [shape: f32[8,64], index: 0, kind: input, shape index: {}]
  %s1 = inlined_call_operand.vmem [shape: f32[64,128], index: 1, kind: input, shape index: {}]
  %s2 = inlined_call_operand.vmem [shape: f32[1,128], index: 2, kind: input, shape index: {}]
  %s3 = inlined_call_operand.vmem [shape: f32[128,128], index: 3, kind: input, shape index: {}]
  %s4 = inlined_call_operand.vmem [shape: f32[1,128], index: 4, kind: input, shape index: {}]
  %s5 = inlined_call_operand.vmem [shape: f32[128,128], index: 5, kind: input, shape index: {}]
  %s6 = inlined_call_operand.vmem [shape: f32[1,128], index: 6, kind: input, shape index: {}]
  %s7 = inlined_call_operand.hbm [shape: f32[8,128], index: 7, kind: output, shape index: {}]
  %s8 = sld [smem:[#allocation0]]
  $region38: #{neuralnet_forward.1} parent=0
    _
  %s10 = ssub.s32 1, %s8
  %s11 = scalar_select 0, %s10, %s8
  $region1: #{neuralnet_forward.1} parent=0
    #allocation2 [shape = 'u8[4096]{0}', space=vmem, size = 0x1000, scoped, tag = 'output window, operand 0, single buffered']
    #allocation3 [shape = 's32[1]{0}', space=sflag, size = 0x4, scoped, tag = 'scoped memory for neuralnet_forward.1']
    %12 = vsyncpa [#allocation3], 0
    // Predicated region
    $region2: #{neuralnet_forward.1} parent=1 // pred_check
      _
    $region3: #{neuralnet_forward.1} parent=1 // pred_check_branch
      %14 = sbr.rel (0) target = $region5
    $region4: #{neuralnet_forward.1} parent=1 // pred_region
      _
    $region5: #{neuralnet_forward.1} parent=1 // pred_fallthru
      _
    // Predicated region
    $region6: #{neuralnet_forward.1} parent=1 // pred_check
      _
    $region7: #{neuralnet_forward.1} parent=1 // pred_check_branch
      %16 = sbr.rel (0) target = $region9
    $region8: #{neuralnet_forward.1} parent=1 // pred_region
      _
    $region9: #{neuralnet_forward.1} parent=1 // pred_fallthru
      _
    // Predicated region
    $region10: #{neuralnet_forward.1} parent=1 // pred_check
      _
    $region11: #{neuralnet_forward.1} parent=1 // pred_check_branch
      %18 = sbr.rel (0) target = $region13
    $region12: #{neuralnet_forward.1} parent=1 // pred_region
      _
    $region13: #{neuralnet_forward.1} parent=1 // pred_fallthru
      _
    // Predicated region
    $region14: #{neuralnet_forward.1} parent=1 // pred_check
      _
    $region15: #{neuralnet_forward.1} parent=1 // pred_check_branch
      %20 = sbr.rel (0) target = $region17
    $region16: #{neuralnet_forward.1} parent=1 // pred_region
      _
    $region17: #{neuralnet_forward.1} parent=1 // pred_fallthru
      _
    // Predicated region
    $region18: #{neuralnet_forward.1} parent=1 // pred_check
      _
    $region19: #{neuralnet_forward.1} parent=1 // pred_check_branch
      %22 = sbr.rel (0) target = $region21
    $region20: #{neuralnet_forward.1} parent=1 // pred_region
      _
    $region21: #{neuralnet_forward.1} parent=1 // pred_fallthru
      _
    // Predicated region
    $region22: #{neuralnet_forward.1} parent=1 // pred_check
      _
    $region23: #{neuralnet_forward.1} parent=1 // pred_check_branch
      %24 = sbr.rel (0) target = $region25
    $region24: #{neuralnet_forward.1} parent=1 // pred_region
      _
    $region25: #{neuralnet_forward.1} parent=1 // pred_fallthru
      _
    // Predicated region
    $region26: #{neuralnet_forward.1} parent=1 // pred_check
      _
    $region27: #{neuralnet_forward.1} parent=1 // pred_check_branch
      %26 = sbr.rel (0) target = $region29
    $region28: #{neuralnet_forward.1} parent=1 // pred_region
      _
    $region29: #{neuralnet_forward.1} parent=1 // pred_fallthru
      _
    %v27 = vld [vmem:[%s0] sm:$0xff]
    %v28 = vld [vmem:[%s1] sm:$0xff]
    %v29 = vld [vmem:[%s1 + $0x8] sm:$0xff]
    %v30 = vld [vmem:[%s1 + $0x10] sm:$0xff]
    %v31 = vld [vmem:[%s1 + $0x18] sm:$0xff]
    %v32 = vld [vmem:[%s1 + $0x20] sm:$0xff]
    %v33 = vld [vmem:[%s1 + $0x28] sm:$0xff]
    %v34 = vld [vmem:[%s1 + $0x30] sm:$0xff]
    %v35 = vld [vmem:[%s1 + $0x38] sm:$0xff]
    %v36 = vld [vmem:[%s2] sm:$0x1]
    %v38 = vlaneseq
    %v39 = vshrl.u32 %v38, 7
    %v40 = vsub.s32 0, %v39
    %v41 = vrot.slane %v36, %v40
    %vm43 = vcmask 523264
    %v45 = vsel %vm43, %v27, 0
    %47 = vmatprep.subr.mxu0 0.0
    %48 = vmatpush1.msra.mxu0 0.0
    %49 = vmatprep.subr.mxu0 0.0
    %50 = vmatpush1.msra.mxu0 0.0
    %51 = vmatprep.subr.mxu0 0.0
    %52 = vmatpush1.msra.mxu0 0.0
    %53 = vmatprep.subr.mxu0 0.0
    %54 = vmatpush1.msra.mxu0 0.0
    %55 = vmatprep.subr.mxu0 0.0
    %56 = vmatpush1.msra.mxu0 0.0
    %57 = vmatprep.subr.mxu0 0.0
    %58 = vmatpush1.msra.mxu0 0.0
    %59 = vmatprep.subr.mxu0 0.0
    %60 = vmatpush1.msra.mxu0 0.0
    %61 = vmatprep.subr.mxu0 0.0
    %62 = vmatpush1.msra.mxu0 0.0
    %63 = vmatprep.subr.mxu0 0.0
    %64 = vmatpush1.msra.mxu0 %v35
    %65 = vmatprep.subr.mxu0 0.0
    %66 = vmatpush1.msra.mxu0 %v34
    %67 = vmatprep.subr.mxu0 0.0
    %68 = vmatpush1.msra.mxu0 %v33
    %69 = vmatprep.subr.mxu0 0.0
    %70 = vmatpush1.msra.mxu0 %v32
    %71 = vmatprep.subr.mxu0 0.0
    %72 = vmatpush1.msra.mxu0 %v31
    %73 = vmatprep.subr.mxu0 0.0
    %74 = vmatpush1.msra.mxu0 %v30
    %75 = vmatprep.subr.mxu0 0.0
    %76 = vmatpush1.msra.mxu0 %v29
    %77 = vmatprep.subr.mxu0 0.0
    %78 = vmatpush1.msra.mxu0 %v28
    %79 = vmatprep.subr.mxu0 0.0
    %80 = vmatpush2.msra.mxu0 0.0
    %81 = vmatprep.subr.mxu0 0.0
    %82 = vmatpush2.msra.mxu0 0.0
    %83 = vmatprep.subr.mxu0 0.0
    %84 = vmatpush2.msra.mxu0 0.0
    %85 = vmatprep.subr.mxu0 0.0
    %86 = vmatpush2.msra.mxu0 0.0
    %87 = vmatprep.subr.mxu0 0.0
    %88 = vmatpush2.msra.mxu0 0.0
    %89 = vmatprep.subr.mxu0 0.0
    %90 = vmatpush2.msra.mxu0 0.0
    %91 = vmatprep.subr.mxu0 0.0
    %92 = vmatpush2.msra.mxu0 0.0
    %93 = vmatprep.subr.mxu0 0.0
    %94 = vmatpush2.msra.mxu0 0.0
    %95 = vmatprep.subr.mxu0 0.0
    %96 = vmatpush2.msra.mxu0 0.0
    %97 = vmatprep.subr.mxu0 0.0
    %98 = vmatpush2.msra.mxu0 0.0
    %99 = vmatprep.subr.mxu0 0.0
    %100 = vmatpush2.msra.mxu0 0.0
    %101 = vmatprep.subr.mxu0 0.0
    %102 = vmatpush2.msra.mxu0 0.0
    %103 = vmatprep.subr.mxu0 0.0
    %104 = vmatpush2.msra.mxu0 0.0
    %105 = vmatprep.subr.mxu0 0.0
    %106 = vmatpush2.msra.mxu0 0.0
    %107 = vmatprep.subr.mxu0 0.0
    %108 = vmatpush2.msra.mxu0 0.0
    %109 = vmatprep.subr.mxu0 0.0
    %110 = vmatpush2.msra.mxu0 0.0
    %111 = vmatprep.mubr.f32.mxu0 0.0
    %112 = vmatmul.mubr.f32.gmra.mxu0 %v45
    %v113 = vpop.f32.mrf.mxu0
    %v114 = vadd.f32 %v41, %v113
    %v115 = vpop.f32.mrf.mxu0
    %116 = vdwg.mxu0
    %v117 = vmax.f32 %v114, 0.0
    %v118 = vld [vmem:[%s3] sm:$0xff]
    %v119 = vld [vmem:[%s3 + $0x8] sm:$0xff]
    %v120 = vld [vmem:[%s3 + $0x10] sm:$0xff]
    %v121 = vld [vmem:[%s3 + $0x18] sm:$0xff]
    %v122 = vld [vmem:[%s3 + $0x20] sm:$0xff]
    %v123 = vld [vmem:[%s3 + $0x28] sm:$0xff]
    %v124 = vld [vmem:[%s3 + $0x30] sm:$0xff]
    %v125 = vld [vmem:[%s3 + $0x38] sm:$0xff]
    %v126 = vld [vmem:[%s3 + $0x40] sm:$0xff]
    %v127 = vld [vmem:[%s3 + $0x48] sm:$0xff]
    %v128 = vld [vmem:[%s3 + $0x50] sm:$0xff]
    %v129 = vld [vmem:[%s3 + $0x58] sm:$0xff]
    %v130 = vld [vmem:[%s3 + $0x60] sm:$0xff]
    %v131 = vld [vmem:[%s3 + $0x68] sm:$0xff]
    %v132 = vld [vmem:[%s3 + $0x70] sm:$0xff]
    %v133 = vld [vmem:[%s3 + $0x78] sm:$0xff]
    %v134 = vld [vmem:[%s4] sm:$0x1]
    %v136 = vlaneseq
    %v137 = vshrl.u32 %v136, 7
    %v138 = vsub.s32 0, %v137
    %v139 = vrot.slane %v134, %v138
    %141 = vmatprep.subr.mxu0 0.0
    %142 = vmatpush1.msra.mxu0 %v133
    %143 = vmatprep.subr.mxu0 0.0
    %144 = vmatpush1.msra.mxu0 %v132
    %145 = vmatprep.subr.mxu0 0.0
    %146 = vmatpush1.msra.mxu0 %v131
    %147 = vmatprep.subr.mxu0 0.0
    %148 = vmatpush1.msra.mxu0 %v130
    %149 = vmatprep.subr.mxu0 0.0
    %150 = vmatpush1.msra.mxu0 %v129
    %151 = vmatprep.subr.mxu0 0.0
    %152 = vmatpush1.msra.mxu0 %v128
    %153 = vmatprep.subr.mxu0 0.0
    %154 = vmatpush1.msra.mxu0 %v127
    %155 = vmatprep.subr.mxu0 0.0
    %156 = vmatpush1.msra.mxu0 %v126
    %157 = vmatprep.subr.mxu0 0.0
    %158 = vmatpush1.msra.mxu0 %v125
    %159 = vmatprep.subr.mxu0 0.0
    %160 = vmatpush1.msra.mxu0 %v124
    %161 = vmatprep.subr.mxu0 0.0
    %162 = vmatpush1.msra.mxu0 %v123
    %163 = vmatprep.subr.mxu0 0.0
    %164 = vmatpush1.msra.mxu0 %v122
    %165 = vmatprep.subr.mxu0 0.0
    %166 = vmatpush1.msra.mxu0 %v121
    %167 = vmatprep.subr.mxu0 0.0
    %168 = vmatpush1.msra.mxu0 %v120
    %169 = vmatprep.subr.mxu0 0.0
    %170 = vmatpush1.msra.mxu0 %v119
    %171 = vmatprep.subr.mxu0 0.0
    %172 = vmatpush1.msra.mxu0 %v118
    %173 = vmatprep.subr.mxu0 0.0
    %174 = vmatpush2.msra.mxu0 0.0
    %175 = vmatprep.subr.mxu0 0.0
    %176 = vmatpush2.msra.mxu0 0.0
    %177 = vmatprep.subr.mxu0 0.0
    %178 = vmatpush2.msra.mxu0 0.0
    %179 = vmatprep.subr.mxu0 0.0
    %180 = vmatpush2.msra.mxu0 0.0
    %181 = vmatprep.subr.mxu0 0.0
    %182 = vmatpush2.msra.mxu0 0.0
    %183 = vmatprep.subr.mxu0 0.0
    %184 = vmatpush2.msra.mxu0 0.0
    %185 = vmatprep.subr.mxu0 0.0
    %186 = vmatpush2.msra.mxu0 0.0
    %187 = vmatprep.subr.mxu0 0.0
    %188 = vmatpush2.msra.mxu0 0.0
    %189 = vmatprep.subr.mxu0 0.0
    %190 = vmatpush2.msra.mxu0 0.0
    %191 = vmatprep.subr.mxu0 0.0
    %192 = vmatpush2.msra.mxu0 0.0
    %193 = vmatprep.subr.mxu0 0.0
    %194 = vmatpush2.msra.mxu0 0.0
    %195 = vmatprep.subr.mxu0 0.0
    %196 = vmatpush2.msra.mxu0 0.0
    %197 = vmatprep.subr.mxu0 0.0
    %198 = vmatpush2.msra.mxu0 0.0
    %199 = vmatprep.subr.mxu0 0.0
    %200 = vmatpush2.msra.mxu0 0.0
    %201 = vmatprep.subr.mxu0 0.0
    %202 = vmatpush2.msra.mxu0 0.0
    %203 = vmatprep.subr.mxu0 0.0
    %204 = vmatpush2.msra.mxu0 0.0
    %205 = vmatprep.mubr.f32.mxu0 0.0
    %206 = vmatmul.mubr.f32.gmra.mxu0 %v117
    %v207 = vpop.f32.mrf.mxu0
    %v208 = vadd.f32 %v139, %v207
    %v209 = vpop.f32.mrf.mxu0
    %210 = vdwg.mxu0
    %v211 = vmax.f32 %v208, 0.0
    %v212 = vld [vmem:[%s5] sm:$0xff]
    %v213 = vld [vmem:[%s5 + $0x8] sm:$0xff]
    %v214 = vld [vmem:[%s5 + $0x10] sm:$0xff]
    %v215 = vld [vmem:[%s5 + $0x18] sm:$0xff]
    %v216 = vld [vmem:[%s5 + $0x20] sm:$0xff]
    %v217 = vld [vmem:[%s5 + $0x28] sm:$0xff]
    %v218 = vld [vmem:[%s5 + $0x30] sm:$0xff]
    %v219 = vld [vmem:[%s5 + $0x38] sm:$0xff]
    %v220 = vld [vmem:[%s5 + $0x40] sm:$0xff]
    %v221 = vld [vmem:[%s5 + $0x48] sm:$0xff]
    %v222 = vld [vmem:[%s5 + $0x50] sm:$0xff]
    %v223 = vld [vmem:[%s5 + $0x58] sm:$0xff]
    %v224 = vld [vmem:[%s5 + $0x60] sm:$0xff]
    %v225 = vld [vmem:[%s5 + $0x68] sm:$0xff]
    %v226 = vld [vmem:[%s5 + $0x70] sm:$0xff]
    %v227 = vld [vmem:[%s5 + $0x78] sm:$0xff]
    %v228 = vld [vmem:[%s6] sm:$0x1]
    %v230 = vlaneseq
    %v231 = vshrl.u32 %v230, 7
    %v232 = vsub.s32 0, %v231
    %v233 = vrot.slane %v228, %v232
    %235 = vmatprep.subr.mxu0 0.0
    %236 = vmatpush1.msra.mxu0 %v227
    %237 = vmatprep.subr.mxu0 0.0
    %238 = vmatpush1.msra.mxu0 %v226
    %239 = vmatprep.subr.mxu0 0.0
    %240 = vmatpush1.msra.mxu0 %v225
    %241 = vmatprep.subr.mxu0 0.0
    %242 = vmatpush1.msra.mxu0 %v224
    %243 = vmatprep.subr.mxu0 0.0
    %244 = vmatpush1.msra.mxu0 %v223
    %245 = vmatprep.subr.mxu0 0.0
    %246 = vmatpush1.msra.mxu0 %v222
    %247 = vmatprep.subr.mxu0 0.0
    %248 = vmatpush1.msra.mxu0 %v221
    %249 = vmatprep.subr.mxu0 0.0
    %250 = vmatpush1.msra.mxu0 %v220
    %251 = vmatprep.subr.mxu0 0.0
    %252 = vmatpush1.msra.mxu0 %v219
    %253 = vmatprep.subr.mxu0 0.0
    %254 = vmatpush1.msra.mxu0 %v218
    %255 = vmatprep.subr.mxu0 0.0
    %256 = vmatpush1.msra.mxu0 %v217
    %257 = vmatprep.subr.mxu0 0.0
    %258 = vmatpush1.msra.mxu0 %v216
    %259 = vmatprep.subr.mxu0 0.0
    %260 = vmatpush1.msra.mxu0 %v215
    %261 = vmatprep.subr.mxu0 0.0
    %262 = vmatpush1.msra.mxu0 %v214
    %263 = vmatprep.subr.mxu0 0.0
    %264 = vmatpush1.msra.mxu0 %v213
    %265 = vmatprep.subr.mxu0 0.0
    %266 = vmatpush1.msra.mxu0 %v212
    %267 = vmatprep.subr.mxu0 0.0
    %268 = vmatpush2.msra.mxu0 0.0
    %269 = vmatprep.subr.mxu0 0.0
    %270 = vmatpush2.msra.mxu0 0.0
    %271 = vmatprep.subr.mxu0 0.0
    %272 = vmatpush2.msra.mxu0 0.0
    %273 = vmatprep.subr.mxu0 0.0
    %274 = vmatpush2.msra.mxu0 0.0
    %275 = vmatprep.subr.mxu0 0.0
    %276 = vmatpush2.msra.mxu0 0.0
    %277 = vmatprep.subr.mxu0 0.0
    %278 = vmatpush2.msra.mxu0 0.0
    %279 = vmatprep.subr.mxu0 0.0
    %280 = vmatpush2.msra.mxu0 0.0
    %281 = vmatprep.subr.mxu0 0.0
    %282 = vmatpush2.msra.mxu0 0.0
    %283 = vmatprep.subr.mxu0 0.0
    %284 = vmatpush2.msra.mxu0 0.0
    %285 = vmatprep.subr.mxu0 0.0
    %286 = vmatpush2.msra.mxu0 0.0
    %287 = vmatprep.subr.mxu0 0.0
    %288 = vmatpush2.msra.mxu0 0.0
    %289 = vmatprep.subr.mxu0 0.0
    %290 = vmatpush2.msra.mxu0 0.0
    %291 = vmatprep.subr.mxu0 0.0
    %292 = vmatpush2.msra.mxu0 0.0
    %293 = vmatprep.subr.mxu0 0.0
    %294 = vmatpush2.msra.mxu0 0.0
    %295 = vmatprep.subr.mxu0 0.0
    %296 = vmatpush2.msra.mxu0 0.0
    %297 = vmatprep.subr.mxu0 0.0
    %298 = vmatpush2.msra.mxu0 0.0
    %299 = vmatprep.mubr.f32.mxu0 0.0
    %300 = vmatmul.mubr.f32.gmra.mxu0 %v211
    %v301 = vpop.f32.mrf.mxu0
    %v302 = vadd.f32 %v233, %v301
    %v303 = vpop.f32.mrf.mxu0
    %304 = vdwg.mxu0
    %305 = vmax.xlane.f32.xlu0 %v302
    %v306 = vpop.xlane.xlu0 %305
    %v307 = vsub.f32 %v302, %v306
    %v308 = vmul.f32 %v307, 1.442695
    %v309 = vpow.pop %v308
    %310 = vadd.xlane.f32.xlu0 %v309
    %v311 = vpop.xlane.xlu0 %310
    %v312 = vlog2.pop %v311
    %v313 = vmul.f32 %v312, 0.6931472
    %v314 = vsub.f32 %v307, %v313
    %315 = vst [vmem:[#allocation2] sm:$0xff] %v314
    // Predicated region
    $region30: #{neuralnet_forward.1} parent=1 // pred_check
      _
    $region31: #{neuralnet_forward.1} parent=1 // pred_check_branch
      %317 = sbr.rel (0) target = $region33
    $region32: #{neuralnet_forward.1} parent=1 // pred_region
      %s319 = ssub.s32 128, 128
      %320 = vsyncadd [#allocation3], %s319
      %s322 = sshll.u32 [#allocation2], 4
      %s323 = int_to_ptr.vmem [resolvable:$true] %s322
      %325 = dma.vmem_to_hbm [thread:$0]  %s323, 128, %s7, [#allocation3]
    $region33: #{neuralnet_forward.1} parent=1 // pred_fallthru
      _
    // Predicated region
    $region34: #{neuralnet_forward.1} parent=1 // pred_check
      _
    $region35: #{neuralnet_forward.1} parent=1 // pred_check_branch
      %327 = sbr.rel (0) target = $region37
    $region36: #{neuralnet_forward.1} parent=1 // pred_region
      %328 = dma.done [#allocation3], 128
    $region37: #{neuralnet_forward.1} parent=1 // pred_fallthru
      _
    %329 = vsyncpa [#allocation3], 1

</llo_original>
